<compile_context>
chip_gen: v7x
topology: tpu7x:2x2x1
jax: 0.10.0
libtpu: 0.0.40
codegen_flags: <defaults>
</compile_context>

<pallas_src>
import jax
import jax.numpy as jnp
from jax.experimental import pallas as pl
from jax.experimental.pallas import tpu as pltpu


# ----------------------------------------------------------------------------
# Kernel: one M-tile of the batched MLP.  Weights are VMEM-resident.
# ----------------------------------------------------------------------------
def fusion_mlp_kernel(instr_ref, state_ref,
                      w1i_ref, w1s_ref, b1_ref,
                      w2_ref, b2_ref,
                      w3_ref, b3_ref,
                      out_ref):
    # Activations arrive as f32; cast to bf16 only at the MXU inputs so every
    # matmul runs native bf16 x bf16 -> f32 accumulation.
    instr = instr_ref[...].astype(jnp.bfloat16)      # (TM, instr_dim)
    state = state_ref[...].astype(jnp.bfloat16)      # (TM, state_dim)

    # Layer 1: cat([instr, state], -1) @ W1 + b1  ==  split matmul
    h1 = (jnp.dot(instr, w1i_ref[...], preferred_element_type=jnp.float32)
          + jnp.dot(state, w1s_ref[...], preferred_element_type=jnp.float32)
          + b1_ref[...])
    h1 = jnp.maximum(h1, 0.0)                        # ReLU, (TM, 256) f32

    # Layer 2
    h2 = jnp.dot(h1.astype(jnp.bfloat16), w2_ref[...],
                 preferred_element_type=jnp.float32) + b2_ref[...]
    h2 = jnp.maximum(h2, 0.0)                        # ReLU, (TM, 128) f32

    # Layer 3 (output padded to a lane-dense width; sliced in the wrapper)
    out_ref[...] = (jnp.dot(h2.astype(jnp.bfloat16), w3_ref[...],
                            preferred_element_type=jnp.float32)
                    + b3_ref[...])


# ----------------------------------------------------------------------------
# Parameter init (mimics torch.nn.Linear uniform +/- 1/sqrt(fan_in)).
# Weights stored as bf16; final projection padded to 128 lanes.
# ----------------------------------------------------------------------------
def _round_up(x, m):
    return (x + m - 1) // m * m


def init_params(key, instr_dim, state_dim, latent_dim):
    fan_in1 = instr_dim + state_dim
    ks = jax.random.split(key, 6)

    def lin(kw, kb, fan_in, fan_out):
        bound = 1.0 / float(fan_in) ** 0.5
        w = jax.random.uniform(kw, (fan_in, fan_out), jnp.float32, -bound, bound)
        b = jax.random.uniform(kb, (1, fan_out), jnp.float32, -bound, bound)
        return w, b

    w1, b1 = lin(ks[0], ks[1], fan_in1, 256)
    w2, b2 = lin(ks[2], ks[3], 256, 128)
    w3, b3 = lin(ks[4], ks[5], 128, latent_dim)

    latent_pad = _round_up(latent_dim, 128)          # lane-dense output width
    w3p = jnp.zeros((128, latent_pad), jnp.float32).at[:, :latent_dim].set(w3)
    b3p = jnp.zeros((1, latent_pad), jnp.float32).at[:, :latent_dim].set(b3)

    return {
        "w1i": w1[:instr_dim].astype(jnp.bfloat16),   # (instr_dim, 256)
        "w1s": w1[instr_dim:].astype(jnp.bfloat16),   # (state_dim, 256)
        "b1": b1,                                     # (1, 256) f32
        "w2": w2.astype(jnp.bfloat16),                # (256, 128)
        "b2": b2,                                     # (1, 128) f32
        "w3": w3p.astype(jnp.bfloat16),               # (128, latent_pad)
        "b3": b3p,                                    # (1, latent_pad) f32
        "latent_dim": latent_dim,
    }


# ----------------------------------------------------------------------------
# Batched pallas_call wrapper: grid over M-tiles of the batch, weights pinned.
# ----------------------------------------------------------------------------
def _mlp_pallas(instr_mean, state, params, tile_m=256):
    """instr_mean: (B, instr_dim) f32, state: (B, state_dim) f32 -> (B, latent_dim) f32."""
    B, instr_dim = instr_mean.shape
    state_dim = state.shape[1]
    latent_pad = params["w3"].shape[1]
    latent_dim = params["latent_dim"]

    # Tile of 256 rows fills the MXU on v6e/v7x (128 also fine on v5e); for
    # tiny batches shrink the tile to the sublane-aligned batch size.
    tile_m = int(min(tile_m, _round_up(B, 8)))
    b_pad = _round_up(B, tile_m)
    if b_pad != B:
        instr_mean = jnp.pad(instr_mean, ((0, b_pad - B), (0, 0)))
        state = jnp.pad(state, ((0, b_pad - B), (0, 0)))

    def row_spec(d):
        return pl.BlockSpec((tile_m, d), lambda i: (i, 0))

    def pinned(arr):
        # Constant index_map: block loaded once, VMEM-resident for the grid.
        return pl.BlockSpec(arr.shape, lambda i: (0, 0))

    out = pl.pallas_call(
        fusion_mlp_kernel,
        out_shape=jax.ShapeDtypeStruct((b_pad, latent_pad), jnp.float32),
        grid=(b_pad // tile_m,),
        in_specs=[
            row_spec(instr_dim),          # instruction means stream per tile
            row_spec(state_dim),          # state rows stream per tile
            pinned(params["w1i"]),
            pinned(params["w1s"]),
            pinned(params["b1"]),
            pinned(params["w2"]),
            pinned(params["b2"]),
            pinned(params["w3"]),
            pinned(params["b3"]),
        ],
        out_specs=pl.BlockSpec((tile_m, latent_pad), lambda i: (i, 0)),
        compiler_params=pltpu.CompilerParams(
            dimension_semantics=("parallel",)),   # batch tiles across TCs (v7x)
    )(instr_mean, state,
      params["w1i"], params["w1s"], params["b1"],
      params["w2"], params["b2"],
      params["w3"], params["b3"])

    return out[:B, :latent_dim]


# ----------------------------------------------------------------------------
# Batched public API: (B, seq, instr_dim) or (B, instr_dim)  +  (B, state_dim)
# ----------------------------------------------------------------------------
def working_fusion_encoder_batched(instr_emb, state_obs, params, tile_m=256):
    instr_emb = jnp.asarray(instr_emb, jnp.float32)
    state_obs = jnp.asarray(state_obs, jnp.float32)
    if instr_emb.ndim == 3:
        instr_mean = jnp.mean(instr_emb, axis=1)          # per-example seq mean
    else:
        assert instr_emb.ndim == 2, instr_emb.shape
        instr_mean = instr_emb
    assert state_obs.ndim == 2, state_obs.shape
    assert instr_mean.shape[0] == state_obs.shape[0], (
        instr_mean.shape, state_obs.shape)
    return _mlp_pallas(instr_mean, state_obs, params, tile_m=tile_m)


# ----------------------------------------------------------------------------
# Module-faithful single-example API (matches WorkingFusionEncoder.forward).
# ----------------------------------------------------------------------------
def working_fusion_encoder(instr_emb, state_obs, params):
    instr_emb = jnp.asarray(instr_emb, jnp.float32)
    state_obs = jnp.asarray(state_obs, jnp.float32)

    # Replicate the torch dim-normalization logic.
    if instr_emb.ndim == 2:
        instr_vec = jnp.mean(instr_emb, axis=0)           # mean over seq
    elif instr_emb.ndim > 2:
        instr_vec = jnp.squeeze(instr_emb)
        if instr_vec.ndim == 2:
            # torch would cat (k, D) with (1, S): only valid when k == 1.
            assert instr_vec.shape[0] == 1, (
                f"instr_emb squeezed to {instr_vec.shape}; expected one row")
            instr_vec = instr_vec[0]
        assert instr_vec.ndim == 1, instr_vec.shape
    else:
        instr_vec = instr_emb

    state_vec = jnp.squeeze(state_obs) if state_obs.ndim > 1 else state_obs
    assert state_vec.ndim == 1, f"state_obs squeezed to {state_vec.shape}"

    out = _mlp_pallas(instr_vec[None, :], state_vec[None, :], params)
    return out[0]                                          # .squeeze(0)


# ----------------------------------------------------------------------------
# Pure-JAX reference with identical bf16 math (for numerical verification).
# ----------------------------------------------------------------------------
def _reference(instr_mean, state, params):
    latent_dim = params["latent_dim"]
    h1 = (jnp.dot(instr_mean.astype(jnp.bfloat16), params["w1i"],
                  preferred_element_type=jnp.float32)
          + jnp.dot(state.astype(jnp.bfloat16), params["w1s"],
                    preferred_element_type=jnp.float32)
          + params["b1"])
    h1 = jnp.maximum(h1, 0.0)
    h2 = jnp.dot(h1.astype(jnp.bfloat16), params["w2"],
                 preferred_element_type=jnp.float32) + params["b2"]
    h2 = jnp.maximum(h2, 0.0)
    out = jnp.dot(h2.astype(jnp.bfloat16), params["w3"],
                  preferred_element_type=jnp.float32) + params["b3"]
    return out[:, :latent_dim]


if __name__ == "__main__":
    instr_dim, state_dim, latent_dim, seq, batch = 32, 32, 16, 8, 4

    key = jax.random.PRNGKey(0)
    k_params, k_instr, k_state, k_binstr, k_bstate = jax.random.split(key, 5)

    params = init_params(k_params, instr_dim, state_dim, latent_dim)

    # --- module-faithful single-example path (torch forward semantics) -----
    instr_emb = jax.random.normal(k_instr, (seq, instr_dim), jnp.float32)
    state_obs = jax.random.normal(k_state, (1, state_dim), jnp.float32)
    out1 = jax.block_until_ready(working_fusion_encoder(instr_emb, state_obs, params))
    ref1 = _reference(jnp.mean(instr_emb, axis=0, keepdims=True),
                      state_obs.reshape(1, -1), params)[0]
    assert out1.shape == (latent_dim,), out1.shape
    assert jnp.allclose(out1, ref1, atol=1e-2, rtol=1e-2), "single-example mismatch"

    # --- batched path (the performance-oriented entry point) ---------------
    instr_b = jax.random.normal(k_binstr, (batch, seq, instr_dim), jnp.float32)
    state_b = jax.random.normal(k_bstate, (batch, state_dim), jnp.float32)
    out_b = jax.block_until_ready(
        working_fusion_encoder_batched(instr_b, state_b, params))
    ref_b = _reference(jnp.mean(instr_b, axis=1), state_b, params)
    assert out_b.shape == (batch, latent_dim), out_b.shape
    assert jnp.allclose(out_b, ref_b, atol=1e-2, rtol=1e-2), "batched mismatch"

    print("KERNEL_OK")
</pallas_src>

<mosaic_0001>
module attributes {stable_mosaic.version = 11 : i64} {
  func.func @fusion_mlp_kernel(%arg0: i32, %arg1: memref<8x32xf32, #tpu.memory_space<vmem>>, %arg2: memref<8x32xf32, #tpu.memory_space<vmem>>, %arg3: memref<32x256xbf16, #tpu.memory_space<vmem>>, %arg4: memref<32x256xbf16, #tpu.memory_space<vmem>>, %arg5: memref<1x256xf32, #tpu.memory_space<vmem>>, %arg6: memref<256x128xbf16, #tpu.memory_space<vmem>>, %arg7: memref<1x128xf32, #tpu.memory_space<vmem>>, %arg8: memref<128x128xbf16, #tpu.memory_space<vmem>>, %arg9: memref<1x128xf32, #tpu.memory_space<vmem>>, %arg10: memref<8x128xf32, #tpu.memory_space<vmem>>) attributes {dimension_semantics = [#tpu.dimension_semantics<parallel>], iteration_bounds = array<i64: 1>, scalar_prefetch = 0 : i64, scratch_operands = 0 : i64, tpu.core_type = #tpu.core_type<tc>, window_params = [{transform_indices = @transform_0, window_bounds = array<i64: 8, 32>}, {transform_indices = @transform_1, window_bounds = array<i64: 8, 32>}, {pipeline_mode = #tpu.pipeline_mode<synchronous>, transform_indices = @transform_2, window_bounds = array<i64: 32, 256>}, {pipeline_mode = #tpu.pipeline_mode<synchronous>, transform_indices = @transform_3, window_bounds = array<i64: 32, 256>}, {pipeline_mode = #tpu.pipeline_mode<synchronous>, transform_indices = @transform_4, window_bounds = array<i64: 1, 256>}, {pipeline_mode = #tpu.pipeline_mode<synchronous>, transform_indices = @transform_5, window_bounds = array<i64: 256, 128>}, {pipeline_mode = #tpu.pipeline_mode<synchronous>, transform_indices = @transform_6, window_bounds = array<i64: 1, 128>}, {pipeline_mode = #tpu.pipeline_mode<synchronous>, transform_indices = @transform_7, window_bounds = array<i64: 128, 128>}, {pipeline_mode = #tpu.pipeline_mode<synchronous>, transform_indices = @transform_8, window_bounds = array<i64: 1, 128>}, {transform_indices = @transform_9, window_bounds = array<i64: 8, 128>}]} {
    %c0 = arith.constant 0 : index
    %c0_0 = arith.constant 0 : index
    %0 = vector.load %arg1[%c0, %c0_0] : memref<8x32xf32, #tpu.memory_space<vmem>>, vector<8x32xf32>
    %1 = arith.truncf %0 : vector<8x32xf32> to vector<8x32xbf16>
    %c0_1 = arith.constant 0 : index
    %c0_2 = arith.constant 0 : index
    %2 = vector.load %arg2[%c0_1, %c0_2] : memref<8x32xf32, #tpu.memory_space<vmem>>, vector<8x32xf32>
    %3 = arith.truncf %2 : vector<8x32xf32> to vector<8x32xbf16>
    %c0_3 = arith.constant 0 : index
    %c0_4 = arith.constant 0 : index
    %4 = vector.load %arg3[%c0_3, %c0_4] : memref<32x256xbf16, #tpu.memory_space<vmem>>, vector<32x256xbf16>
    %cst = arith.constant dense<0.000000e+00> : vector<8x256xf32>
    %5 = tpu.matmul %1, %4, %cst {dimension_numbers = #tpu.dot_dimension_numbers<[1], [0], [0], [1], [0, 0, 1, 1], [], []>} : vector<8x32xbf16>, vector<32x256xbf16>, vector<8x256xf32> -> vector<8x256xf32>
    %c0_5 = arith.constant 0 : index
    %c0_6 = arith.constant 0 : index
    %6 = vector.load %arg4[%c0_5, %c0_6] : memref<32x256xbf16, #tpu.memory_space<vmem>>, vector<32x256xbf16>
    %cst_7 = arith.constant dense<0.000000e+00> : vector<8x256xf32>
    %7 = tpu.matmul %3, %6, %cst_7 {dimension_numbers = #tpu.dot_dimension_numbers<[1], [0], [0], [1], [0, 0, 1, 1], [], []>} : vector<8x32xbf16>, vector<32x256xbf16>, vector<8x256xf32> -> vector<8x256xf32>
    %8 = arith.addf %5, %7 : vector<8x256xf32>
    %c0_8 = arith.constant 0 : index
    %c0_9 = arith.constant 0 : index
    %9 = vector.load %arg5[%c0_8, %c0_9] : memref<1x256xf32, #tpu.memory_space<vmem>>, vector<1x256xf32>
    %10 = vector.broadcast %9 : vector<1x256xf32> to vector<8x256xf32>
    %11 = arith.addf %8, %10 : vector<8x256xf32>
    %cst_10 = arith.constant 0.000000e+00 : f32
    %12 = vector.broadcast %cst_10 : f32 to vector<8x256xf32>
    %13 = arith.maximumf %11, %12 : vector<8x256xf32>
    %14 = arith.truncf %13 : vector<8x256xf32> to vector<8x256xbf16>
    %c0_11 = arith.constant 0 : index
    %c0_12 = arith.constant 0 : index
    %15 = vector.load %arg6[%c0_11, %c0_12] : memref<256x128xbf16, #tpu.memory_space<vmem>>, vector<256x128xbf16>
    %cst_13 = arith.constant dense<0.000000e+00> : vector<8x128xf32>
    %16 = tpu.matmul %14, %15, %cst_13 {dimension_numbers = #tpu.dot_dimension_numbers<[1], [0], [0], [1], [0, 0, 1, 1], [], []>} : vector<8x256xbf16>, vector<256x128xbf16>, vector<8x128xf32> -> vector<8x128xf32>
    %c0_14 = arith.constant 0 : index
    %c0_15 = arith.constant 0 : index
    %17 = vector.load %arg7[%c0_14, %c0_15] : memref<1x128xf32, #tpu.memory_space<vmem>>, vector<1x128xf32>
    %18 = vector.broadcast %17 : vector<1x128xf32> to vector<8x128xf32>
    %19 = arith.addf %16, %18 : vector<8x128xf32>
    %cst_16 = arith.constant 0.000000e+00 : f32
    %20 = vector.broadcast %cst_16 : f32 to vector<8x128xf32>
    %21 = arith.maximumf %19, %20 : vector<8x128xf32>
    %22 = arith.truncf %21 : vector<8x128xf32> to vector<8x128xbf16>
    %c0_17 = arith.constant 0 : index
    %c0_18 = arith.constant 0 : index
    %23 = vector.load %arg8[%c0_17, %c0_18] : memref<128x128xbf16, #tpu.memory_space<vmem>>, vector<128x128xbf16>
    %cst_19 = arith.constant dense<0.000000e+00> : vector<8x128xf32>
    %24 = tpu.matmul %22, %23, %cst_19 {dimension_numbers = #tpu.dot_dimension_numbers<[1], [0], [0], [1], [0, 0, 1, 1], [], []>} : vector<8x128xbf16>, vector<128x128xbf16>, vector<8x128xf32> -> vector<8x128xf32>
    %c0_20 = arith.constant 0 : index
    %c0_21 = arith.constant 0 : index
    %25 = vector.load %arg9[%c0_20, %c0_21] : memref<1x128xf32, #tpu.memory_space<vmem>>, vector<1x128xf32>
    %26 = vector.broadcast %25 : vector<1x128xf32> to vector<8x128xf32>
    %27 = arith.addf %24, %26 : vector<8x128xf32>
    %c0_22 = arith.constant 0 : index
    %c0_23 = arith.constant 0 : index
    %28 = vector.load %arg10[%c0_22, %c0_23] : memref<8x128xf32, #tpu.memory_space<vmem>>, vector<8x128xf32>
    tpu.vector_store %arg10[%c0_22, %c0_23], %27 {strides = array<i32>} : memref<8x128xf32, #tpu.memory_space<vmem>>, vector<8x128xf32>,
    return
  }
  func.func @transform_0(%arg0: i32) -> (i32, i32) {
    %c0_i32 = arith.constant 0 : i32
    %c0_i32_0 = arith.constant 0 : i32
    return %arg0, %c0_i32 : i32, i32
  }
  func.func @transform_1(%arg0: i32) -> (i32, i32) {
    %c0_i32 = arith.constant 0 : i32
    %c0_i32_0 = arith.constant 0 : i32
    return %arg0, %c0_i32 : i32, i32
  }
  func.func @transform_2(%arg0: i32) -> (i32, i32) {
    %c0_i32 = arith.constant 0 : i32
    %c0_i32_0 = arith.constant 0 : i32
    %c0_i32_1 = arith.constant 0 : i32
    return %c0_i32, %c0_i32_0 : i32, i32
  }
  func.func @transform_3(%arg0: i32) -> (i32, i32) {
    %c0_i32 = arith.constant 0 : i32
    %c0_i32_0 = arith.constant 0 : i32
    %c0_i32_1 = arith.constant 0 : i32
    return %c0_i32, %c0_i32_0 : i32, i32
  }
  func.func @transform_4(%arg0: i32) -> (i32, i32) {
    %c0_i32 = arith.constant 0 : i32
    %c0_i32_0 = arith.constant 0 : i32
    %c0_i32_1 = arith.constant 0 : i32
    return %c0_i32, %c0_i32_0 : i32, i32
  }
  func.func @transform_5(%arg0: i32) -> (i32, i32) {
    %c0_i32 = arith.constant 0 : i32
    %c0_i32_0 = arith.constant 0 : i32
    %c0_i32_1 = arith.constant 0 : i32
    return %c0_i32, %c0_i32_0 : i32, i32
  }
  func.func @transform_6(%arg0: i32) -> (i32, i32) {
    %c0_i32 = arith.constant 0 : i32
    %c0_i32_0 = arith.constant 0 : i32
    %c0_i32_1 = arith.constant 0 : i32
    return %c0_i32, %c0_i32_0 : i32, i32
  }
  func.func @transform_7(%arg0: i32) -> (i32, i32) {
    %c0_i32 = arith.constant 0 : i32
    %c0_i32_0 = arith.constant 0 : i32
    %c0_i32_1 = arith.constant 0 : i32
    return %c0_i32, %c0_i32_0 : i32, i32
  }
  func.func @transform_8(%arg0: i32) -> (i32, i32) {
    %c0_i32 = arith.constant 0 : i32
    %c0_i32_0 = arith.constant 0 : i32
    %c0_i32_1 = arith.constant 0 : i32
    return %c0_i32, %c0_i32_0 : i32, i32
  }
  func.func @transform_9(%arg0: i32) -> (i32, i32) {
    %c0_i32 = arith.constant 0 : i32
    %c0_i32_0 = arith.constant 0 : i32
    return %arg0, %c0_i32 : i32, i32
  }
}

</mosaic_0001>

<llo_original>
// kernel: tpu_custom_call.1
$region0: #{tpu_custom_call.1}
  #allocation0 [shape = 'u32[]', space=smem, size = 0x4, offset = 0x4, fixed_abs, tag = 'smem constant byte address 0x4 - core index']
  #allocation1 [shape = 'u32[144,128]{1,0:T(1,128)}', space=vmem, size = 0x12000, scoped, tag = 'internal scratch']
  %s0 = inlined_call_operand.hbm [shape: f32[8,32], index: 0, kind: input, shape index: {}]
  %s1 = inlined_call_operand.hbm [shape: f32[8,32], index: 1, kind: input, shape index: {}]
  %s2 = inlined_call_operand.hbm [shape: bf16[32,256], index: 2, kind: input, shape index: {}]
  %s3 = inlined_call_operand.hbm [shape: bf16[32,256], index: 3, kind: input, shape index: {}]
  %s4 = inlined_call_operand.vmem [shape: f32[1,256], index: 4, kind: input, shape index: {}]
  %s5 = inlined_call_operand.hbm [shape: bf16[256,128], index: 5, kind: input, shape index: {}]
  %s6 = inlined_call_operand.vmem [shape: f32[1,128], index: 6, kind: input, shape index: {}]
  %s7 = inlined_call_operand.hbm [shape: bf16[128,128], index: 7, kind: input, shape index: {}]
  %s8 = inlined_call_operand.vmem [shape: f32[1,128], index: 8, kind: input, shape index: {}]
  %s9 = inlined_call_operand.hbm [shape: f32[8,128], index: 9, kind: output, shape index: {}]
  %s10 = sld [smem:[#allocation0]]
  $region70: #{tpu_custom_call.1} parent=0
    _
  %s12 = ssub.s32 1, %s10
  %s13 = scalar_select 0, %s12, %s10
  $region1: #{tpu_custom_call.1} parent=0
    #allocation2 [shape = 'u8[4096]{0}', space=vmem, size = 0x1000, scoped, tag = 'input window, operand 0, single buffered']
    #allocation3 [shape = 's32[1]{0}', space=sflag, size = 0x4, scoped, tag = 'scoped memory for tpu_custom_call.1']
    #allocation4 [shape = 's32[1]{0}', space=sflag, size = 0x4, scoped, tag = 'scoped memory for tpu_custom_call.1']
    #allocation5 [shape = 'u8[4096]{0}', space=vmem, size = 0x1000, scoped, tag = 'input window, operand 1, single buffered']
    #allocation6 [shape = 's32[1]{0}', space=sflag, size = 0x4, scoped, tag = 'scoped memory for tpu_custom_call.1']
    #allocation7 [shape = 'u8[16384]{0}', space=vmem, size = 0x4000, scoped, tag = 'input window, operand 2, single buffered']
    #allocation8 [shape = 'u8[16384]{0}', space=vmem, size = 0x4000, scoped, tag = 'input window, operand 3, single buffered']
    #allocation9 [shape = 's32[1]{0}', space=sflag, size = 0x4, scoped, tag = 'scoped memory for tpu_custom_call.1']
    #allocation10 [shape = 'u8[65536]{0}', space=vmem, size = 0x10000, scoped, tag = 'input window, operand 5, single buffered']
    #allocation11 [shape = 'u8[32768]{0}', space=vmem, size = 0x8000, scoped, tag = 'input window, operand 7, single buffered']
    #allocation12 [shape = 's32[1]{0}', space=sflag, size = 0x4, scoped, tag = 'scoped memory for tpu_custom_call.1']
    #allocation13 [shape = 'u8[4096]{0}', space=vmem, size = 0x1000, scoped, tag = 'output window, operand 0, single buffered']
    %14 = vsyncpa [#allocation3], 0
    %15 = vsyncpa [#allocation6], 0
    %16 = vsyncpa [#allocation9], 0
    %17 = vsyncpa [#allocation12], 0
    %18 = vsyncpa [#allocation4], 0
    // Predicated region
    $region2: #{tpu_custom_call.1} parent=1 // pred_check
      _
    $region3: #{tpu_custom_call.1} parent=1 // pred_check_branch
      %20 = sbr.rel (0) target = $region5
    $region4: #{tpu_custom_call.1} parent=1 // pred_region
      %s22 = ssub.s32 128, 128
      %23 = vsyncadd [#allocation3], %s22
      %s25 = sshll.u32 [#allocation2], 4
      %s26 = int_to_ptr.vmem [resolvable:$true] %s25
      %28 = dma.hbm_to_vmem [thread:$0]  %s0, 128, %s26, [#allocation3]
    $region5: #{tpu_custom_call.1} parent=1 // pred_fallthru
      _
    // Predicated region
    $region6: #{tpu_custom_call.1} parent=1 // pred_check
      _
    $region7: #{tpu_custom_call.1} parent=1 // pred_check_branch
      %30 = sbr.rel (0) target = $region9
    $region8: #{tpu_custom_call.1} parent=1 // pred_region
      %s32 = ssub.s32 128, 128
      %33 = vsyncadd [#allocation6], %s32
      %s35 = sshll.u32 [#allocation5], 4
      %s36 = int_to_ptr.vmem [resolvable:$true] %s35
      %38 = dma.hbm_to_vmem [thread:$0]  %s1, 128, %s36, [#allocation6]
    $region9: #{tpu_custom_call.1} parent=1 // pred_fallthru
      _
    // Predicated region
    $region10: #{tpu_custom_call.1} parent=1 // pred_check
      _
    $region11: #{tpu_custom_call.1} parent=1 // pred_check_branch
      %40 = sbr.rel (0) target = $region13
    $region12: #{tpu_custom_call.1} parent=1 // pred_region
      %s42 = ssub.s32 512, 512
      %43 = vsyncadd [#allocation6], %s42
      %s44 = sshll.u32 [#allocation7], 4
      %s45 = int_to_ptr.vmem [resolvable:$true] %s44
      %50 = dma.hbm_to_vmem [thread:$0]  %s2, 512, %s45, [#allocation6], 128, 128, 8
    $region13: #{tpu_custom_call.1} parent=1 // pred_fallthru
      _
    // Predicated region
    $region14: #{tpu_custom_call.1} parent=1 // pred_check
      _
    $region15: #{tpu_custom_call.1} parent=1 // pred_check_branch
      %52 = sbr.rel (0) target = $region17
    $region16: #{tpu_custom_call.1} parent=1 // pred_region
      %s54 = ssub.s32 512, 512
      %55 = vsyncadd [#allocation9], %s54
      %s56 = sshll.u32 [#allocation8], 4
      %s57 = int_to_ptr.vmem [resolvable:$true] %s56
      %62 = dma.hbm_to_vmem [thread:$0]  %s3, 512, %s57, [#allocation9], 128, 128, 8
    $region17: #{tpu_custom_call.1} parent=1 // pred_fallthru
      _
    // Predicated region
    $region18: #{tpu_custom_call.1} parent=1 // pred_check
      _
    $region19: #{tpu_custom_call.1} parent=1 // pred_check_branch
      %64 = sbr.rel (0) target = $region21
    $region20: #{tpu_custom_call.1} parent=1 // pred_region
      _
    $region21: #{tpu_custom_call.1} parent=1 // pred_fallthru
      _
    // Predicated region
    $region22: #{tpu_custom_call.1} parent=1 // pred_check
      _
    $region23: #{tpu_custom_call.1} parent=1 // pred_check_branch
      %66 = sbr.rel (0) target = $region25
    $region24: #{tpu_custom_call.1} parent=1 // pred_region
      %s68 = ssub.s32 2048, 2048
      %69 = vsyncadd [#allocation9], %s68
      %s70 = sshll.u32 [#allocation10], 4
      %s71 = int_to_ptr.vmem [resolvable:$true] %s70
      %76 = dma.hbm_to_vmem [thread:$0]  %s5, 2048, %s71, [#allocation9], 64, 64, 4
    $region25: #{tpu_custom_call.1} parent=1 // pred_fallthru
      _
    // Predicated region
    $region26: #{tpu_custom_call.1} parent=1 // pred_check
      _
    $region27: #{tpu_custom_call.1} parent=1 // pred_check_branch
      %78 = sbr.rel (0) target = $region29
    $region28: #{tpu_custom_call.1} parent=1 // pred_region
      _
    $region29: #{tpu_custom_call.1} parent=1 // pred_fallthru
      _
    // Predicated region
    $region30: #{tpu_custom_call.1} parent=1 // pred_check
      _
    $region31: #{tpu_custom_call.1} parent=1 // pred_check_branch
      %80 = sbr.rel (0) target = $region33
    $region32: #{tpu_custom_call.1} parent=1 // pred_region
      %s82 = ssub.s32 1024, 1024
      %83 = vsyncadd [#allocation12], %s82
      %s84 = sshll.u32 [#allocation11], 4
      %s85 = int_to_ptr.vmem [resolvable:$true] %s84
      %90 = dma.hbm_to_vmem [thread:$0]  %s7, 1024, %s85, [#allocation12], 64, 64, 4
    $region33: #{tpu_custom_call.1} parent=1 // pred_fallthru
      _
    // Predicated region
    $region34: #{tpu_custom_call.1} parent=1 // pred_check
      _
    $region35: #{tpu_custom_call.1} parent=1 // pred_check_branch
      %92 = sbr.rel (0) target = $region37
    $region36: #{tpu_custom_call.1} parent=1 // pred_region
      _
    $region37: #{tpu_custom_call.1} parent=1 // pred_fallthru
      _
    // Predicated region
    $region38: #{tpu_custom_call.1} parent=1 // pred_check
      _
    $region39: #{tpu_custom_call.1} parent=1 // pred_check_branch
      %94 = sbr.rel (0) target = $region41
    $region40: #{tpu_custom_call.1} parent=1 // pred_region
      %95 = dma.done [#allocation3], 128
    $region41: #{tpu_custom_call.1} parent=1 // pred_fallthru
      _
    // Predicated region
    $region42: #{tpu_custom_call.1} parent=1 // pred_check
      _
    $region43: #{tpu_custom_call.1} parent=1 // pred_check_branch
      %97 = sbr.rel (0) target = $region45
    $region44: #{tpu_custom_call.1} parent=1 // pred_region
      %98 = dma.done [#allocation6], 128
    $region45: #{tpu_custom_call.1} parent=1 // pred_fallthru
      _
    // Predicated region
    $region46: #{tpu_custom_call.1} parent=1 // pred_check
      _
    $region47: #{tpu_custom_call.1} parent=1 // pred_check_branch
      %100 = sbr.rel (0) target = $region49
    $region48: #{tpu_custom_call.1} parent=1 // pred_region
      %101 = dma.done [#allocation6], 512
    $region49: #{tpu_custom_call.1} parent=1 // pred_fallthru
      _
    // Predicated region
    $region50: #{tpu_custom_call.1} parent=1 // pred_check
      _
    $region51: #{tpu_custom_call.1} parent=1 // pred_check_branch
      %103 = sbr.rel (0) target = $region53
    $region52: #{tpu_custom_call.1} parent=1 // pred_region
      %104 = dma.done [#allocation9], 512
    $region53: #{tpu_custom_call.1} parent=1 // pred_fallthru
      _
    // Predicated region
    $region54: #{tpu_custom_call.1} parent=1 // pred_check
      _
    $region55: #{tpu_custom_call.1} parent=1 // pred_check_branch
      %106 = sbr.rel (0) target = $region57
    $region56: #{tpu_custom_call.1} parent=1 // pred_region
      %107 = dma.done [#allocation9], 2048
    $region57: #{tpu_custom_call.1} parent=1 // pred_fallthru
      _
    // Predicated region
    $region58: #{tpu_custom_call.1} parent=1 // pred_check
      _
    $region59: #{tpu_custom_call.1} parent=1 // pred_check_branch
      %109 = sbr.rel (0) target = $region61
    $region60: #{tpu_custom_call.1} parent=1 // pred_region
      %110 = dma.done [#allocation12], 1024
    $region61: #{tpu_custom_call.1} parent=1 // pred_fallthru
      _
    %v112 = vld [vmem:[#allocation2] sm:$0xff]
    %v113 = vpack.c.bf16 %v112, %v112
    %v114 = vld [vmem:[#allocation5] sm:$0xff]
    %v115 = vpack.c.bf16 %v114, %v114
    %v116 = vld [vmem:[#allocation7] sm:$0xff]
    %v117 = vld [vmem:[#allocation7 + $0x8] sm:$0xff]
    %v118 = vld [vmem:[#allocation7 + $0x10] sm:$0xff]
    %v119 = vld [vmem:[#allocation7 + $0x18] sm:$0xff]
    %v120 = vld [vmem:[#allocation8] sm:$0xff]
    %v121 = vld [vmem:[#allocation8 + $0x8] sm:$0xff]
    %v122 = vld [vmem:[#allocation8 + $0x10] sm:$0xff]
    %v123 = vld [vmem:[#allocation8 + $0x18] sm:$0xff]
    %v128 = vunpack.c.l.b16 %v120
    %v129 = vunpack.c.h.b16 %v120
    %v130 = vunpack.c.l.b16 %v121
    %v131 = vunpack.c.h.b16 %v121
    %v132 = vunpack.c.l.b16 %v122
    %v133 = vunpack.c.h.b16 %v122
    %v134 = vunpack.c.l.b16 %v123
    %v135 = vunpack.c.h.b16 %v123
    %v136 = vpack.c.b16 %v130, %v128
    %v137 = vpack.c.b16 %v131, %v129
    %v138 = vpack.c.b16 %v134, %v132
    %v139 = vpack.c.b16 %v135, %v133
    %vm144 = vcmask 261120
    %v146 = vsel %vm144, %v115, 0
    %148 = vmatprep.subr.bf16.mxu0 %v137
    %149 = vmatpush1.bf16.msra.mxu0 %v136
    %150 = vmatprep.subr.bf16.mxu0 %v139
    %151 = vmatpush1.bf16.msra.mxu0 %v138
    %152 = vmatprep.subr.bf16.mxu0 0
    %153 = vmatpush1.bf16.msra.mxu0 0
    %154 = vmatprep.subr.bf16.mxu0 0
    %155 = vmatpush1.bf16.msra.mxu0 0
    %156 = vmatprep.subr.bf16.mxu0 0
    %157 = vmatpush1.bf16.msra.mxu0 0
    %158 = vmatprep.subr.bf16.mxu0 0
    %159 = vmatpush1.bf16.msra.mxu0 0
    %160 = vmatprep.subr.bf16.mxu0 0
    %161 = vmatpush1.bf16.msra.mxu0 0
    %162 = vmatprep.subr.bf16.mxu0 0
    %163 = vmatpush1.bf16.msra.mxu0 0
    %164 = vmatprep.subr.bf16.mxu0 0
    %165 = vmatpush1.bf16.msra.mxu0 0
    %166 = vmatprep.subr.bf16.mxu0 0
    %167 = vmatpush1.bf16.msra.mxu0 0
    %168 = vmatprep.subr.bf16.mxu0 0
    %169 = vmatpush1.bf16.msra.mxu0 0
    %170 = vmatprep.subr.bf16.mxu0 0
    %171 = vmatpush1.bf16.msra.mxu0 0
    %172 = vmatprep.subr.bf16.mxu0 0
    %173 = vmatpush1.bf16.msra.mxu0 0
    %174 = vmatprep.subr.bf16.mxu0 0
    %175 = vmatpush1.bf16.msra.mxu0 0
    %176 = vmatprep.subr.bf16.mxu0 0
    %177 = vmatpush1.bf16.msra.mxu0 0
    %178 = vmatprep.subr.bf16.mxu0 0
    %179 = vmatpush1.bf16.msra.mxu0 0
    %180 = vmatprep.mubr.bf16.mxu0 0
    %181 = vmatmul.mubr.bf16.gmra.mrb[0].mxu0 %v146
    %v182 = vpop.f32.mrb[0].mxu0
    %v183 = vadd.f32 0.0, %v182
    %v184 = vpop.f32.mrb[0].mxu0
    %v185 = vadd.f32 0.0, %v184
    %v186 = vpop.f32.mrb[0].mxu0
    %v187 = vpop.f32.mrb[0].mxu0
    %188 = vdwg.mxu0
    %v193 = vunpack.c.l.b16 %v116
    %v194 = vunpack.c.h.b16 %v116
    %v195 = vunpack.c.l.b16 %v117
    %v196 = vunpack.c.h.b16 %v117
    %v197 = vunpack.c.l.b16 %v118
    %v198 = vunpack.c.h.b16 %v118
    %v199 = vunpack.c.l.b16 %v119
    %v200 = vunpack.c.h.b16 %v119
    %v201 = vpack.c.b16 %v195, %v193
    %v202 = vpack.c.b16 %v196, %v194
    %v203 = vpack.c.b16 %v199, %v197
    %v204 = vpack.c.b16 %v200, %v198
    %v210 = vsel %vm144, %v113, 0
    %212 = vmatprep.subr.bf16.mxu0 %v202
    %213 = vmatpush1.bf16.msra.mxu0 %v201
    %214 = vmatprep.subr.bf16.mxu0 %v204
    %215 = vmatpush1.bf16.msra.mxu0 %v203
    %216 = vmatprep.subr.bf16.mxu0 0
    %217 = vmatpush1.bf16.msra.mxu0 0
    %218 = vmatprep.subr.bf16.mxu0 0
    %219 = vmatpush1.bf16.msra.mxu0 0
    %220 = vmatprep.subr.bf16.mxu0 0
    %221 = vmatpush1.bf16.msra.mxu0 0
    %222 = vmatprep.subr.bf16.mxu0 0
    %223 = vmatpush1.bf16.msra.mxu0 0
    %224 = vmatprep.subr.bf16.mxu0 0
    %225 = vmatpush1.bf16.msra.mxu0 0
    %226 = vmatprep.subr.bf16.mxu0 0
    %227 = vmatpush1.bf16.msra.mxu0 0
    %228 = vmatprep.subr.bf16.mxu0 0
    %229 = vmatpush1.bf16.msra.mxu0 0
    %230 = vmatprep.subr.bf16.mxu0 0
    %231 = vmatpush1.bf16.msra.mxu0 0
    %232 = vmatprep.subr.bf16.mxu0 0
    %233 = vmatpush1.bf16.msra.mxu0 0
    %234 = vmatprep.subr.bf16.mxu0 0
    %235 = vmatpush1.bf16.msra.mxu0 0
    %236 = vmatprep.subr.bf16.mxu0 0
    %237 = vmatpush1.bf16.msra.mxu0 0
    %238 = vmatprep.subr.bf16.mxu0 0
    %239 = vmatpush1.bf16.msra.mxu0 0
    %240 = vmatprep.subr.bf16.mxu0 0
    %241 = vmatpush1.bf16.msra.mxu0 0
    %242 = vmatprep.subr.bf16.mxu0 0
    %243 = vmatpush1.bf16.msra.mxu0 0
    %244 = vmatprep.mubr.bf16.mxu0 0
    %245 = vmatmul.mubr.bf16.gmra.mrb[0].mxu0 %v210
    %v246 = vpop.f32.mrb[0].mxu0
    %v247 = vadd.f32 %v183, %v246
    %v248 = vpop.f32.mrb[0].mxu0
    %v249 = vadd.f32 %v185, %v248
    %v250 = vpop.f32.mrb[0].mxu0
    %v251 = vpop.f32.mrb[0].mxu0
    %252 = vdwg.mxu0
    %v253 = vld [vmem:[%s4] sm:$0x3]
    %v255 = vlaneseq
    %v256 = vshrl.u32 %v255, 7
    %v257 = vsub.s32 0, %v256
    %v258 = vrot.slane %v253, %v257
    %v259 = vlaneseq
    %v260 = vshrl.u32 %v259, 7
    %v261 = vsub.s32 1, %v260
    %v262 = vrot.slane %v253, %v261
    %v265 = vadd.f32 %v247, %v258
    %v266 = vadd.f32 %v249, %v262
    %v267 = vmax.f32 %v265, 0.0
    %v268 = vmax.f32 %v266, 0.0
    %v269 = vpack.c.bf16 %v267, %v267
    %v270 = vpack.c.bf16 %v268, %v268
    %v271 = vld [vmem:[#allocation10] sm:$0xf]
    %v272 = vld [vmem:[#allocation10 + $0x4] sm:$0xf]
    %v273 = vld [vmem:[#allocation10 + $0x8] sm:$0xf]
    %v274 = vld [vmem:[#allocation10 + $0xc] sm:$0xf]
    %v275 = vld [vmem:[#allocation10 + $0x10] sm:$0xf]
    %v276 = vld [vmem:[#allocation10 + $0x14] sm:$0xf]
    %v277 = vld [vmem:[#allocation10 + $0x18] sm:$0xf]
    %v278 = vld [vmem:[#allocation10 + $0x1c] sm:$0xf]
    %v279 = vld [vmem:[#allocation10 + $0x20] sm:$0xf]
    %v280 = vld [vmem:[#allocation10 + $0x24] sm:$0xf]
    %v281 = vld [vmem:[#allocation10 + $0x28] sm:$0xf]
    %v282 = vld [vmem:[#allocation10 + $0x2c] sm:$0xf]
    %v283 = vld [vmem:[#allocation10 + $0x30] sm:$0xf]
    %v284 = vld [vmem:[#allocation10 + $0x34] sm:$0xf]
    %v285 = vld [vmem:[#allocation10 + $0x38] sm:$0xf]
    %v286 = vld [vmem:[#allocation10 + $0x3c] sm:$0xf]
    %v287 = vld [vmem:[#allocation10 + $0x40] sm:$0xf]
    %v288 = vld [vmem:[#allocation10 + $0x44] sm:$0xf]
    %v289 = vld [vmem:[#allocation10 + $0x48] sm:$0xf]
    %v290 = vld [vmem:[#allocation10 + $0x4c] sm:$0xf]
    %v291 = vld [vmem:[#allocation10 + $0x50] sm:$0xf]
    %v292 = vld [vmem:[#allocation10 + $0x54] sm:$0xf]
    %v293 = vld [vmem:[#allocation10 + $0x58] sm:$0xf]
    %v294 = vld [vmem:[#allocation10 + $0x5c] sm:$0xf]
    %v295 = vld [vmem:[#allocation10 + $0x60] sm:$0xf]
    %v296 = vld [vmem:[#allocation10 + $0x64] sm:$0xf]
    %v297 = vld [vmem:[#allocation10 + $0x68] sm:$0xf]
    %v298 = vld [vmem:[#allocation10 + $0x6c] sm:$0xf]
    %v299 = vld [vmem:[#allocation10 + $0x70] sm:$0xf]
    %v300 = vld [vmem:[#allocation10 + $0x74] sm:$0xf]
    %v301 = vld [vmem:[#allocation10 + $0x78] sm:$0xf]
    %v302 = vld [vmem:[#allocation10 + $0x7c] sm:$0xf]
    %v303 = vld [vmem:[%s6] sm:$0x1]
    %v305 = vlaneseq
    %v306 = vshrl.u32 %v305, 7
    %v307 = vsub.s32 0, %v306
    %v308 = vrot.slane %v303, %v307
    %v342 = vunpack.c.l.b16 %v271
    %v343 = vunpack.c.l.b16 %v272
    %v344 = vunpack.c.l.b16 %v273
    %v345 = vunpack.c.l.b16 %v274
    %v346 = vunpack.c.l.b16 %v275
    %v347 = vunpack.c.l.b16 %v276
    %v348 = vunpack.c.l.b16 %v277
    %v349 = vunpack.c.l.b16 %v278
    %v350 = vunpack.c.l.b16 %v279
    %v351 = vunpack.c.l.b16 %v280
    %v352 = vunpack.c.l.b16 %v281
    %v353 = vunpack.c.l.b16 %v282
    %v354 = vunpack.c.l.b16 %v283
    %v355 = vunpack.c.l.b16 %v284
    %v356 = vunpack.c.l.b16 %v285
    %v357 = vunpack.c.l.b16 %v286
    %v358 = vunpack.c.l.b16 %v287
    %v359 = vunpack.c.l.b16 %v288
    %v360 = vunpack.c.l.b16 %v289
    %v361 = vunpack.c.l.b16 %v290
    %v362 = vunpack.c.l.b16 %v291
    %v363 = vunpack.c.l.b16 %v292
    %v364 = vunpack.c.l.b16 %v293
    %v365 = vunpack.c.l.b16 %v294
    %v366 = vunpack.c.l.b16 %v295
    %v367 = vunpack.c.l.b16 %v296
    %v368 = vunpack.c.l.b16 %v297
    %v369 = vunpack.c.l.b16 %v298
    %v370 = vunpack.c.l.b16 %v299
    %v371 = vunpack.c.l.b16 %v300
    %v372 = vunpack.c.l.b16 %v301
    %v373 = vunpack.c.l.b16 %v302
    %v374 = vpack.c.b16 %v343, %v342
    %v375 = vpack.c.b16 %v345, %v344
    %v376 = vpack.c.b16 %v347, %v346
    %v377 = vpack.c.b16 %v349, %v348
    %v378 = vpack.c.b16 %v351, %v350
    %v379 = vpack.c.b16 %v353, %v352
    %v380 = vpack.c.b16 %v355, %v354
    %v381 = vpack.c.b16 %v357, %v356
    %v382 = vpack.c.b16 %v359, %v358
    %v383 = vpack.c.b16 %v361, %v360
    %v384 = vpack.c.b16 %v363, %v362
    %v385 = vpack.c.b16 %v365, %v364
    %v386 = vpack.c.b16 %v367, %v366
    %v387 = vpack.c.b16 %v369, %v368
    %v388 = vpack.c.b16 %v371, %v370
    %v389 = vpack.c.b16 %v373, %v372
    %406 = vmatprep.subr.bf16.mxu0 0
    %407 = vmatpush1.bf16.msra.mxu0 %v374
    %408 = vmatprep.subr.bf16.mxu0 0
    %409 = vmatpush1.bf16.msra.mxu0 %v375
    %410 = vmatprep.subr.bf16.mxu0 0
    %411 = vmatpush1.bf16.msra.mxu0 %v376
    %412 = vmatprep.subr.bf16.mxu0 0
    %413 = vmatpush1.bf16.msra.mxu0 %v377
    %414 = vmatprep.subr.bf16.mxu0 0
    %415 = vmatpush1.bf16.msra.mxu0 %v378
    %416 = vmatprep.subr.bf16.mxu0 0
    %417 = vmatpush1.bf16.msra.mxu0 %v379
    %418 = vmatprep.subr.bf16.mxu0 0
    %419 = vmatpush1.bf16.msra.mxu0 %v380
    %420 = vmatprep.subr.bf16.mxu0 0
    %421 = vmatpush1.bf16.msra.mxu0 %v381
    %422 = vmatprep.subr.bf16.mxu0 0
    %423 = vmatpush1.bf16.msra.mxu0 %v382
    %424 = vmatprep.subr.bf16.mxu0 0
    %425 = vmatpush1.bf16.msra.mxu0 %v383
    %426 = vmatprep.subr.bf16.mxu0 0
    %427 = vmatpush1.bf16.msra.mxu0 %v384
    %428 = vmatprep.subr.bf16.mxu0 0
    %429 = vmatpush1.bf16.msra.mxu0 %v385
    %430 = vmatprep.subr.bf16.mxu0 0
    %431 = vmatpush1.bf16.msra.mxu0 %v386
    %432 = vmatprep.subr.bf16.mxu0 0
    %433 = vmatpush1.bf16.msra.mxu0 %v387
    %434 = vmatprep.subr.bf16.mxu0 0
    %435 = vmatpush1.bf16.msra.mxu0 %v388
    %436 = vmatprep.subr.bf16.mxu0 0
    %437 = vmatpush1.bf16.msra.mxu0 %v389
    %438 = vmatprep.mubr.bf16.mxu0 %v270
    %439 = vmatmul.mubr.bf16.gmra.mrb[0].mxu0 %v269
    %v440 = vpop.f32.mrb[0].mxu0
    %v441 = vadd.f32 %v308, %v440
    %v442 = vpop.f32.mrb[0].mxu0
    %v443 = vpop.f32.mrb[0].mxu0
    %v444 = vpop.f32.mrb[0].mxu0
    %445 = vdwg.mxu0
    %v446 = vmax.f32 %v441, 0.0
    %v447 = vpack.c.bf16 %v446, %v446
    %v448 = vld [vmem:[#allocation11] sm:$0xf]
    %v449 = vld [vmem:[#allocation11 + $0x4] sm:$0xf]
    %v450 = vld [vmem:[#allocation11 + $0x8] sm:$0xf]
    %v451 = vld [vmem:[#allocation11 + $0xc] sm:$0xf]
    %v452 = vld [vmem:[#allocation11 + $0x10] sm:$0xf]
    %v453 = vld [vmem:[#allocation11 + $0x14] sm:$0xf]
    %v454 = vld [vmem:[#allocation11 + $0x18] sm:$0xf]
    %v455 = vld [vmem:[#allocation11 + $0x1c] sm:$0xf]
    %v456 = vld [vmem:[#allocation11 + $0x20] sm:$0xf]
    %v457 = vld [vmem:[#allocation11 + $0x24] sm:$0xf]
    %v458 = vld [vmem:[#allocation11 + $0x28] sm:$0xf]
    %v459 = vld [vmem:[#allocation11 + $0x2c] sm:$0xf]
    %v460 = vld [vmem:[#allocation11 + $0x30] sm:$0xf]
    %v461 = vld [vmem:[#allocation11 + $0x34] sm:$0xf]
    %v462 = vld [vmem:[#allocation11 + $0x38] sm:$0xf]
    %v463 = vld [vmem:[#allocation11 + $0x3c] sm:$0xf]
    %v464 = vld [vmem:[%s8] sm:$0x1]
    %v466 = vlaneseq
    %v467 = vshrl.u32 %v466, 7
    %v468 = vsub.s32 0, %v467
    %v469 = vrot.slane %v464, %v468
    %v487 = vunpack.c.l.b16 %v448
    %v488 = vunpack.c.l.b16 %v449
    %v489 = vunpack.c.l.b16 %v450
    %v490 = vunpack.c.l.b16 %v451
    %v491 = vunpack.c.l.b16 %v452
    %v492 = vunpack.c.l.b16 %v453
    %v493 = vunpack.c.l.b16 %v454
    %v494 = vunpack.c.l.b16 %v455
    %v495 = vunpack.c.l.b16 %v456
    %v496 = vunpack.c.l.b16 %v457
    %v497 = vunpack.c.l.b16 %v458
    %v498 = vunpack.c.l.b16 %v459
    %v499 = vunpack.c.l.b16 %v460
    %v500 = vunpack.c.l.b16 %v461
    %v501 = vunpack.c.l.b16 %v462
    %v502 = vunpack.c.l.b16 %v463
    %v503 = vpack.c.b16 %v488, %v487
    %v504 = vpack.c.b16 %v490, %v489
    %v505 = vpack.c.b16 %v492, %v491
    %v506 = vpack.c.b16 %v494, %v493
    %v507 = vpack.c.b16 %v496, %v495
    %v508 = vpack.c.b16 %v498, %v497
    %v509 = vpack.c.b16 %v500, %v499
    %v510 = vpack.c.b16 %v502, %v501
    %519 = vmatprep.subr.bf16.mxu0 0
    %520 = vmatpush1.bf16.msra.mxu0 %v503
    %521 = vmatprep.subr.bf16.mxu0 0
    %522 = vmatpush1.bf16.msra.mxu0 %v504
    %523 = vmatprep.subr.bf16.mxu0 0
    %524 = vmatpush1.bf16.msra.mxu0 %v505
    %525 = vmatprep.subr.bf16.mxu0 0
    %526 = vmatpush1.bf16.msra.mxu0 %v506
    %527 = vmatprep.subr.bf16.mxu0 0
    %528 = vmatpush1.bf16.msra.mxu0 %v507
    %529 = vmatprep.subr.bf16.mxu0 0
    %530 = vmatpush1.bf16.msra.mxu0 %v508
    %531 = vmatprep.subr.bf16.mxu0 0
    %532 = vmatpush1.bf16.msra.mxu0 %v509
    %533 = vmatprep.subr.bf16.mxu0 0
    %534 = vmatpush1.bf16.msra.mxu0 %v510
    %535 = vmatprep.subr.bf16.mxu0 0
    %536 = vmatpush1.bf16.msra.mxu0 0
    %537 = vmatprep.subr.bf16.mxu0 0
    %538 = vmatpush1.bf16.msra.mxu0 0
    %539 = vmatprep.subr.bf16.mxu0 0
    %540 = vmatpush1.bf16.msra.mxu0 0
    %541 = vmatprep.subr.bf16.mxu0 0
    %542 = vmatpush1.bf16.msra.mxu0 0
    %543 = vmatprep.subr.bf16.mxu0 0
    %544 = vmatpush1.bf16.msra.mxu0 0
    %545 = vmatprep.subr.bf16.mxu0 0
    %546 = vmatpush1.bf16.msra.mxu0 0
    %547 = vmatprep.subr.bf16.mxu0 0
    %548 = vmatpush1.bf16.msra.mxu0 0
    %549 = vmatprep.subr.bf16.mxu0 0
    %550 = vmatpush1.bf16.msra.mxu0 0
    %551 = vmatprep.mubr.bf16.mxu0 0
    %552 = vmatmul.mubr.bf16.gmra.mrb[0].mxu0 %v447
    %v553 = vpop.f32.mrb[0].mxu0
    %v554 = vadd.f32 %v469, %v553
    %v555 = vpop.f32.mrb[0].mxu0
    %v556 = vpop.f32.mrb[0].mxu0
    %v557 = vpop.f32.mrb[0].mxu0
    %558 = vdwg.mxu0
    %559 = vst [vmem:[#allocation13] sm:$0xff] %v554
    // Predicated region
    $region62: #{tpu_custom_call.1} parent=1 // pred_check
      _
    $region63: #{tpu_custom_call.1} parent=1 // pred_check_branch
      %561 = sbr.rel (0) target = $region65
    $region64: #{tpu_custom_call.1} parent=1 // pred_region
      %s563 = ssub.s32 128, 128
      %564 = vsyncadd [#allocation4], %s563
      %s566 = sshll.u32 [#allocation13], 4
      %s567 = int_to_ptr.vmem [resolvable:$true] %s566
      %569 = dma.vmem_to_hbm [thread:$0]  %s567, 128, %s9, [#allocation4]
    $region65: #{tpu_custom_call.1} parent=1 // pred_fallthru
      _
    // Predicated region
    $region66: #{tpu_custom_call.1} parent=1 // pred_check
      _
    $region67: #{tpu_custom_call.1} parent=1 // pred_check_branch
      %571 = sbr.rel (0) target = $region69
    $region68: #{tpu_custom_call.1} parent=1 // pred_region
      %572 = dma.done [#allocation4], 128
    $region69: #{tpu_custom_call.1} parent=1 // pred_fallthru
      _
    %573 = vsyncpa [#allocation3], 1
    %574 = vsyncpa [#allocation6], 1
    %575 = vsyncpa [#allocation9], 1
    %576 = vsyncpa [#allocation12], 1
    %577 = vsyncpa [#allocation4], 1

</llo_original>
